<compile_context>
chip_gen: v6e
topology: v6e:2x2x1
jax: 0.10.0
libtpu: 0.0.40
codegen_flags: <defaults>
</compile_context>

<pallas_src>
import jax
import jax.numpy as jnp
from jax.experimental import pallas as pl
from jax.experimental.pallas import tpu as pltpu

H1, H2, OUT = 128, 64, 2


def _round_up(x, m):
    return (x + m - 1) // m * m


def sarcasm_mlp_kernel(x_ref, w1_ref, b1_ref, w2_ref, b2_ref, w3_ref, b3_ref, o_ref):
    # x_ref: (TB, D) f32 batch tile (the only moving input). Cast to bf16 in-kernel.
    x = x_ref[...].astype(jnp.bfloat16)

    # fc1 + relu : bf16 MXU matmul, f32 accumulation / bias / ReLU
    h1 = jnp.dot(x, w1_ref[...], preferred_element_type=jnp.float32) + b1_ref[...]
    h1 = jnp.maximum(h1, 0.0)

    # fc2 + relu
    h2 = jnp.dot(h1.astype(jnp.bfloat16), w2_ref[...],
                 preferred_element_type=jnp.float32) + b2_ref[...]
    h2 = jnp.maximum(h2, 0.0)

    # fc3 -> (TB, 2) f32, stored directly (masked vst cost is negligible; kernel is
    # HBM/overhead-bound, and this minimizes the output write stream).
    h3 = jnp.dot(h2.astype(jnp.bfloat16), w3_ref[...],
                 preferred_element_type=jnp.float32) + b3_ref[...]
    o_ref[...] = h3.astype(o_ref.dtype)


def _vmem_budget_bytes():
    """Generation-aware usable-VMEM budget (~48 MiB on v7x, ~96 MiB on v5e/v6e)."""
    cap = 64 << 20  # conservative fallback (v7x per-TC VMEM)
    try:
        info = pltpu.get_tpu_info()
        cap = int(getattr(info, "vmem_capacity_bytes", cap))
    except Exception:
        pass
    return min((cap * 3) // 4, 100 << 20)


def _pick_batch_tile(B, D, budget, tb_max=4096):
    """Largest batch tile that fits the VMEM budget (weights resident + pipelined x/out)."""
    Dp = _round_up(D, 128)
    # Resident: bf16 weights + f32 biases (lane-padded to 128 in VMEM).
    resident = (Dp * H1 + H1 * 128 + 128 * 128) * 2 + 3 * 128 * 4
    # Per-row: double-buffered f32 x tile + double-buffered out tile + in-kernel
    # bf16/f32 intermediates (x_bf16, h1, h2, h3), with lane padding.
    per_row = 10 * Dp + 3072
    tb = max(256, min((budget - resident) // per_row, tb_max))
    # >= 2 grid steps for big batches so the "parallel" axis shards across v7x's 2 TCs.
    if B >= 1024:
        tb = min(tb, _round_up(pl.cdiv(B, 2), 8))
    # Keep the block no larger than the 8-aligned batch; last block may be partial.
    tb = min(tb, max(8, (B // 8) * 8))
    return int(_round_up(tb, 8))


def prepare_params(params):
    """One-time prep: bf16 weights, f32 (1, n) biases (avoids per-call re-casts)."""
    w1, b1, w2, b2, w3, b3 = params
    return (w1.astype(jnp.bfloat16), b1.astype(jnp.float32).reshape(1, H1),
            w2.astype(jnp.bfloat16), b2.astype(jnp.float32).reshape(1, H2),
            w3.astype(jnp.bfloat16), b3.astype(jnp.float32).reshape(1, OUT))


def sarcasm_mlp(x, params, *, tb=None):
    """x: (B, input_dim) float32. Returns (B, 2) float32 logits."""
    w1, b1, w2, b2, w3, b3 = params
    B, D = x.shape
    assert w1.shape == (D, H1) and w2.shape == (H1, H2) and w3.shape == (H2, OUT)

    # No-ops if params came through prepare_params.
    w1 = w1.astype(jnp.bfloat16)
    w2 = w2.astype(jnp.bfloat16)
    w3 = w3.astype(jnp.bfloat16)
    b1 = b1.astype(jnp.float32).reshape(1, H1)
    b2 = b2.astype(jnp.float32).reshape(1, H2)
    b3 = b3.astype(jnp.float32).reshape(1, OUT)

    x = x.astype(jnp.float32)  # streamed f32; bf16 cast happens inside the kernel

    # Tiny batches only: pad to the 8-row sublane minimum (negligible traffic).
    B_run = max(B, 8)
    if B_run != B:
        x = jnp.pad(x, ((0, B_run - B), (0, 0)))

    budget = _vmem_budget_bytes()
    if tb is None:
        tb_eff = _pick_batch_tile(B_run, D, budget)
    else:
        tb_eff = _round_up(min(int(tb), max(8, (B_run // 8) * 8)), 8)
    grid = (pl.cdiv(B_run, tb_eff),)

    flops = 2 * B_run * (D * H1 + H1 * H2 + H2 * OUT)
    bytes_accessed = (B_run * (D + OUT) * 4
                      + (D * H1 + H1 * H2 + H2 * OUT) * 2
                      + (H1 + H2 + OUT) * 4)
    cost = pl.CostEstimate(flops=flops, transcendentals=0,
                           bytes_accessed=bytes_accessed)

    out = pl.pallas_call(
        sarcasm_mlp_kernel,
        out_shape=jax.ShapeDtypeStruct((B_run, OUT), jnp.float32),
        grid_spec=pltpu.PrefetchScalarGridSpec(
            num_scalar_prefetch=0,
            grid=grid,
            in_specs=[
                pl.BlockSpec((tb_eff, D), lambda i: (i, 0)),   # x batch tile (moving)
                pl.BlockSpec((D, H1), lambda i: (0, 0)),       # w1 (resident)
                pl.BlockSpec((1, H1), lambda i: (0, 0)),       # b1
                pl.BlockSpec((H1, H2), lambda i: (0, 0)),      # w2
                pl.BlockSpec((1, H2), lambda i: (0, 0)),       # b2
                pl.BlockSpec((H2, OUT), lambda i: (0, 0)),     # w3
                pl.BlockSpec((1, OUT), lambda i: (0, 0)),      # b3
            ],
            out_specs=pl.BlockSpec((tb_eff, OUT), lambda i: (i, 0)),
        ),
        compiler_params=pltpu.CompilerParams(
            dimension_semantics=("parallel",),   # shards grid steps across TCs on v7x
            vmem_limit_bytes=int(budget),
        ),
        cost_estimate=cost,
    )(x, w1, b1, w2, b2, w3, b3)

    return out if B_run == B else out[:B]


def init_params(key, input_dim):
    """Deterministic init mimicking PyTorch Linear (uniform +/- 1/sqrt(fan_in))."""
    ks = jax.random.split(key, 6)

    def linear(kw, kb, fan_in, fan_out):
        bound = 1.0 / jnp.sqrt(fan_in)
        w = jax.random.uniform(kw, (fan_in, fan_out), jnp.float32, -bound, bound)
        b = jax.random.uniform(kb, (1, fan_out), jnp.float32, -bound, bound)
        return w, b

    w1, b1 = linear(ks[0], ks[1], input_dim, H1)
    w2, b2 = linear(ks[2], ks[3], H1, H2)
    w3, b3 = linear(ks[4], ks[5], H2, OUT)
    return (w1, b1, w2, b2, w3, b3)


def sarcasm_mlp_ref_f32(x, params):
    w1, b1, w2, b2, w3, b3 = params
    h = jnp.maximum(x @ w1 + b1, 0.0)
    h = jnp.maximum(h @ w2 + b2, 0.0)
    return h @ w3 + b3


def sarcasm_mlp_ref_bf16(x, params):
    # Emulates the kernel's bf16-input / f32-accumulation path exactly.
    w1, b1, w2, b2, w3, b3 = params
    h = jnp.dot(x.astype(jnp.bfloat16), w1.astype(jnp.bfloat16),
                preferred_element_type=jnp.float32) + b1
    h = jnp.maximum(h, 0.0)
    h = jnp.dot(h.astype(jnp.bfloat16), w2.astype(jnp.bfloat16),
                preferred_element_type=jnp.float32) + b2
    h = jnp.maximum(h, 0.0)
    return jnp.dot(h.astype(jnp.bfloat16), w3.astype(jnp.bfloat16),
                   preferred_element_type=jnp.float32) + b3


if __name__ == "__main__":
    key = jax.random.PRNGKey(0)
    k_x, k_p, k_x2 = jax.random.split(key, 3)

    B, INPUT_DIM = 8, 32
    x = jax.random.normal(k_x, (B, INPUT_DIM), jnp.float32)
    params_f32 = init_params(k_p, INPUT_DIM)
    params = prepare_params(params_f32)   # one-time bf16 weight cast, hoisted out

    out = jax.block_until_ready(sarcasm_mlp(x, params))
    assert out.shape == (B, OUT)
    assert jnp.allclose(out, sarcasm_mlp_ref_bf16(x, params_f32), atol=2e-3, rtol=2e-3)
    assert jnp.allclose(out, sarcasm_mlp_ref_f32(x, params_f32), atol=1e-1, rtol=1e-1)

    # Ragged batch: exercises cdiv grid + partial last block (no wrapper-side pad).
    B2 = 20
    x2 = jax.random.normal(k_x2, (B2, INPUT_DIM), jnp.float32)
    out2 = jax.block_until_ready(sarcasm_mlp(x2, params))
    assert out2.shape == (B2, OUT)
    assert jnp.allclose(out2, sarcasm_mlp_ref_bf16(x2, params_f32), atol=2e-3, rtol=2e-3)

    print("KERNEL_OK")
</pallas_src>

<mosaic_0001>
module attributes {stable_mosaic.version = 11 : i64} {
  func.func @sarcasm_mlp_kernel(%arg0: i32, %arg1: memref<8x32xf32, #tpu.memory_space<vmem>>, %arg2: memref<32x128xbf16, #tpu.memory_space<vmem>>, %arg3: memref<1x128xf32, #tpu.memory_space<vmem>>, %arg4: memref<128x64xbf16, #tpu.memory_space<vmem>>, %arg5: memref<1x64xf32, #tpu.memory_space<vmem>>, %arg6: memref<64x2xbf16, #tpu.memory_space<vmem>>, %arg7: memref<1x2xf32, #tpu.memory_space<vmem>>, %arg8: memref<8x2xf32, #tpu.memory_space<vmem>>) attributes {dimension_semantics = [#tpu.dimension_semantics<parallel>], iteration_bounds = array<i64: 1>, scalar_prefetch = 0 : i64, scratch_operands = 0 : i64, tpu.core_type = #tpu.core_type<tc>, window_params = [{transform_indices = @transform_0, window_bounds = array<i64: 8, 32>}, {pipeline_mode = #tpu.pipeline_mode<synchronous>, transform_indices = @transform_1, window_bounds = array<i64: 32, 128>}, {pipeline_mode = #tpu.pipeline_mode<synchronous>, transform_indices = @transform_2, window_bounds = array<i64: 1, 128>}, {pipeline_mode = #tpu.pipeline_mode<synchronous>, transform_indices = @transform_3, window_bounds = array<i64: 128, 64>}, {pipeline_mode = #tpu.pipeline_mode<synchronous>, transform_indices = @transform_4, window_bounds = array<i64: 1, 64>}, {pipeline_mode = #tpu.pipeline_mode<synchronous>, transform_indices = @transform_5, window_bounds = array<i64: 64, 2>}, {pipeline_mode = #tpu.pipeline_mode<synchronous>, transform_indices = @transform_6, window_bounds = array<i64: 1, 2>}, {transform_indices = @transform_7, window_bounds = array<i64: 8, 2>}]} {
    %c0 = arith.constant 0 : index
    %c0_0 = arith.constant 0 : index
    %0 = vector.load %arg1[%c0, %c0_0] : memref<8x32xf32, #tpu.memory_space<vmem>>, vector<8x32xf32>
    %1 = arith.truncf %0 : vector<8x32xf32> to vector<8x32xbf16>
    %c0_1 = arith.constant 0 : index
    %c0_2 = arith.constant 0 : index
    %2 = vector.load %arg2[%c0_1, %c0_2] : memref<32x128xbf16, #tpu.memory_space<vmem>>, vector<32x128xbf16>
    %cst = arith.constant dense<0.000000e+00> : vector<8x128xf32>
    %3 = tpu.matmul %1, %2, %cst {dimension_numbers = #tpu.dot_dimension_numbers<[1], [0], [0], [1], [0, 0, 1, 1], [], []>} : vector<8x32xbf16>, vector<32x128xbf16>, vector<8x128xf32> -> vector<8x128xf32>
    %c0_3 = arith.constant 0 : index
    %c0_4 = arith.constant 0 : index
    %4 = vector.load %arg3[%c0_3, %c0_4] : memref<1x128xf32, #tpu.memory_space<vmem>>, vector<1x128xf32>
    %5 = vector.broadcast %4 : vector<1x128xf32> to vector<8x128xf32>
    %6 = arith.addf %3, %5 : vector<8x128xf32>
    %cst_5 = arith.constant 0.000000e+00 : f32
    %7 = vector.broadcast %cst_5 : f32 to vector<8x128xf32>
    %8 = arith.maximumf %6, %7 : vector<8x128xf32>
    %9 = arith.truncf %8 : vector<8x128xf32> to vector<8x128xbf16>
    %c0_6 = arith.constant 0 : index
    %c0_7 = arith.constant 0 : index
    %10 = vector.load %arg4[%c0_6, %c0_7] : memref<128x64xbf16, #tpu.memory_space<vmem>>, vector<128x64xbf16>
    %cst_8 = arith.constant dense<0.000000e+00> : vector<8x64xf32>
    %11 = tpu.matmul %9, %10, %cst_8 {dimension_numbers = #tpu.dot_dimension_numbers<[1], [0], [0], [1], [0, 0, 1, 1], [], []>} : vector<8x128xbf16>, vector<128x64xbf16>, vector<8x64xf32> -> vector<8x64xf32>
    %c0_9 = arith.constant 0 : index
    %c0_10 = arith.constant 0 : index
    %12 = vector.load %arg5[%c0_9, %c0_10] : memref<1x64xf32, #tpu.memory_space<vmem>>, vector<1x64xf32>
    %13 = vector.broadcast %12 : vector<1x64xf32> to vector<8x64xf32>
    %14 = arith.addf %11, %13 : vector<8x64xf32>
    %cst_11 = arith.constant 0.000000e+00 : f32
    %15 = vector.broadcast %cst_11 : f32 to vector<8x64xf32>
    %16 = arith.maximumf %14, %15 : vector<8x64xf32>
    %17 = arith.truncf %16 : vector<8x64xf32> to vector<8x64xbf16>
    %c0_12 = arith.constant 0 : index
    %c0_13 = arith.constant 0 : index
    %18 = vector.load %arg6[%c0_12, %c0_13] : memref<64x2xbf16, #tpu.memory_space<vmem>>, vector<64x2xbf16>
    %cst_14 = arith.constant dense<0.000000e+00> : vector<8x2xf32>
    %19 = tpu.matmul %17, %18, %cst_14 {dimension_numbers = #tpu.dot_dimension_numbers<[1], [0], [0], [1], [0, 0, 1, 1], [], []>} : vector<8x64xbf16>, vector<64x2xbf16>, vector<8x2xf32> -> vector<8x2xf32>
    %c0_15 = arith.constant 0 : index
    %c0_16 = arith.constant 0 : index
    %20 = vector.load %arg7[%c0_15, %c0_16] : memref<1x2xf32, #tpu.memory_space<vmem>>, vector<1x2xf32>
    %21 = vector.broadcast %20 : vector<1x2xf32> to vector<8x2xf32>
    %22 = arith.addf %19, %21 : vector<8x2xf32>
    %c0_17 = arith.constant 0 : index
    %c0_18 = arith.constant 0 : index
    %23 = vector.load %arg8[%c0_17, %c0_18] : memref<8x2xf32, #tpu.memory_space<vmem>>, vector<8x2xf32>
    tpu.vector_store %arg8[%c0_17, %c0_18], %22 {strides = array<i32>} : memref<8x2xf32, #tpu.memory_space<vmem>>, vector<8x2xf32>,
    return
  }
  func.func @transform_0(%arg0: i32) -> (i32, i32) {
    %c0_i32 = arith.constant 0 : i32
    %c0_i32_0 = arith.constant 0 : i32
    return %arg0, %c0_i32 : i32, i32
  }
  func.func @transform_1(%arg0: i32) -> (i32, i32) {
    %c0_i32 = arith.constant 0 : i32
    %c0_i32_0 = arith.constant 0 : i32
    %c0_i32_1 = arith.constant 0 : i32
    return %c0_i32, %c0_i32_0 : i32, i32
  }
  func.func @transform_2(%arg0: i32) -> (i32, i32) {
    %c0_i32 = arith.constant 0 : i32
    %c0_i32_0 = arith.constant 0 : i32
    %c0_i32_1 = arith.constant 0 : i32
    return %c0_i32, %c0_i32_0 : i32, i32
  }
  func.func @transform_3(%arg0: i32) -> (i32, i32) {
    %c0_i32 = arith.constant 0 : i32
    %c0_i32_0 = arith.constant 0 : i32
    %c0_i32_1 = arith.constant 0 : i32
    return %c0_i32, %c0_i32_0 : i32, i32
  }
  func.func @transform_4(%arg0: i32) -> (i32, i32) {
    %c0_i32 = arith.constant 0 : i32
    %c0_i32_0 = arith.constant 0 : i32
    %c0_i32_1 = arith.constant 0 : i32
    return %c0_i32, %c0_i32_0 : i32, i32
  }
  func.func @transform_5(%arg0: i32) -> (i32, i32) {
    %c0_i32 = arith.constant 0 : i32
    %c0_i32_0 = arith.constant 0 : i32
    %c0_i32_1 = arith.constant 0 : i32
    return %c0_i32, %c0_i32_0 : i32, i32
  }
  func.func @transform_6(%arg0: i32) -> (i32, i32) {
    %c0_i32 = arith.constant 0 : i32
    %c0_i32_0 = arith.constant 0 : i32
    %c0_i32_1 = arith.constant 0 : i32
    return %c0_i32, %c0_i32_0 : i32, i32
  }
  func.func @transform_7(%arg0: i32) -> (i32, i32) {
    %c0_i32 = arith.constant 0 : i32
    %c0_i32_0 = arith.constant 0 : i32
    return %arg0, %c0_i32 : i32, i32
  }
}

</mosaic_0001>

<llo_original>
// kernel: tpu_custom_call.1
$region0: #{tpu_custom_call.1}
  #allocation0 [shape = 'u32[]', space=smem, size = 0x4, offset = 0x4, fixed_abs, tag = 'smem constant byte address 0x4 - core index']
  #allocation1 [shape = 'u32[144,128]{1,0:T(1,128)}', space=vmem, size = 0x12000, scoped, tag = 'internal scratch']
  %s0 = inlined_call_operand.vmem [shape: f32[8,32], index: 0, kind: input, shape index: {}]
  %s1 = inlined_call_operand.vmem [shape: bf16[32,128], index: 1, kind: input, shape index: {}]
  %s2 = inlined_call_operand.vmem [shape: f32[1,128], index: 2, kind: input, shape index: {}]
  %s3 = inlined_call_operand.vmem [shape: bf16[128,64], index: 3, kind: input, shape index: {}]
  %s4 = inlined_call_operand.vmem [shape: f32[1,64], index: 4, kind: input, shape index: {}]
  %s5 = inlined_call_operand.vmem [shape: bf16[64,2], index: 5, kind: input, shape index: {}]
  %s6 = inlined_call_operand.vmem [shape: f32[1,2], index: 6, kind: input, shape index: {}]
  %s7 = inlined_call_operand.vmem [shape: f32[8,2], index: 7, kind: output, shape index: {}]
  %s8 = sld [smem:[#allocation0]]
  $region38: #{tpu_custom_call.1} parent=0
    _
  %s10 = ssub.s32 1, %s8
  %s11 = scalar_select 0, %s10, %s8
  // Predicated region
  $region2: #{tpu_custom_call.1} parent=0 // pred_check
    _
  $region3: #{tpu_custom_call.1} parent=0 // pred_check_branch
    %13 = sbr.rel (0) target = $region5
  $region4: #{tpu_custom_call.1} parent=0 // pred_region
    _
  $region5: #{tpu_custom_call.1} parent=0 // pred_fallthru
    _
  // Predicated region
  $region6: #{tpu_custom_call.1} parent=0 // pred_check
    _
  $region7: #{tpu_custom_call.1} parent=0 // pred_check_branch
    %15 = sbr.rel (0) target = $region9
  $region8: #{tpu_custom_call.1} parent=0 // pred_region
    _
  $region9: #{tpu_custom_call.1} parent=0 // pred_fallthru
    _
  // Predicated region
  $region10: #{tpu_custom_call.1} parent=0 // pred_check
    _
  $region11: #{tpu_custom_call.1} parent=0 // pred_check_branch
    %17 = sbr.rel (0) target = $region13
  $region12: #{tpu_custom_call.1} parent=0 // pred_region
    _
  $region13: #{tpu_custom_call.1} parent=0 // pred_fallthru
    _
  // Predicated region
  $region14: #{tpu_custom_call.1} parent=0 // pred_check
    _
  $region15: #{tpu_custom_call.1} parent=0 // pred_check_branch
    %19 = sbr.rel (0) target = $region17
  $region16: #{tpu_custom_call.1} parent=0 // pred_region
    _
  $region17: #{tpu_custom_call.1} parent=0 // pred_fallthru
    _
  // Predicated region
  $region18: #{tpu_custom_call.1} parent=0 // pred_check
    _
  $region19: #{tpu_custom_call.1} parent=0 // pred_check_branch
    %21 = sbr.rel (0) target = $region21
  $region20: #{tpu_custom_call.1} parent=0 // pred_region
    _
  $region21: #{tpu_custom_call.1} parent=0 // pred_fallthru
    _
  // Predicated region
  $region22: #{tpu_custom_call.1} parent=0 // pred_check
    _
  $region23: #{tpu_custom_call.1} parent=0 // pred_check_branch
    %23 = sbr.rel (0) target = $region25
  $region24: #{tpu_custom_call.1} parent=0 // pred_region
    _
  $region25: #{tpu_custom_call.1} parent=0 // pred_fallthru
    _
  // Predicated region
  $region26: #{tpu_custom_call.1} parent=0 // pred_check
    _
  $region27: #{tpu_custom_call.1} parent=0 // pred_check_branch
    %25 = sbr.rel (0) target = $region29
  $region28: #{tpu_custom_call.1} parent=0 // pred_region
    _
  $region29: #{tpu_custom_call.1} parent=0 // pred_fallthru
    _
  %v27 = vld [vmem:[%s0] sm:$0xff]
  %v28 = vpack.c.bf16 %v27, %v27
  %v29 = vld [vmem:[%s1] sm:$0xf]
  %v30 = vld [vmem:[%s1 + $0x4] sm:$0xf]
  %v31 = vld [vmem:[%s1 + $0x8] sm:$0xf]
  %v32 = vld [vmem:[%s1 + $0xc] sm:$0xf]
  %v33 = vld [vmem:[%s2] sm:$0x1]
  %v35 = vlaneseq
  %v36 = vshrl.u32 %v35, 7
  %v37 = vsub.s32 0, %v36
  %v38 = vrot.slane %v33, %v37
  %v44 = vunpack.c.l.b16 %v29
  %v45 = vunpack.c.l.b16 %v30
  %v46 = vunpack.c.l.b16 %v31
  %v47 = vunpack.c.l.b16 %v32
  %v48 = vpack.c.b16 %v45, %v44
  %v49 = vpack.c.b16 %v47, %v46
  %vm52 = vcmask 261120
  %v54 = vsel %vm52, %v28, 0
  %56 = vmatprep.subr.bf16.mxu0 0
  %57 = vmatpush1.bf16.msra.mxu0 0
  %58 = vmatprep.subr.bf16.mxu0 0
  %59 = vmatpush1.bf16.msra.mxu0 0
  %60 = vmatprep.subr.bf16.mxu0 0
  %61 = vmatpush1.bf16.msra.mxu0 0
  %62 = vmatprep.subr.bf16.mxu0 0
  %63 = vmatpush1.bf16.msra.mxu0 0
  %64 = vmatprep.subr.bf16.mxu0 0
  %65 = vmatpush1.bf16.msra.mxu0 0
  %66 = vmatprep.subr.bf16.mxu0 0
  %67 = vmatpush1.bf16.msra.mxu0 0
  %68 = vmatprep.subr.bf16.mxu0 0
  %69 = vmatpush1.bf16.msra.mxu0 %v49
  %70 = vmatprep.subr.bf16.mxu0 0
  %71 = vmatpush1.bf16.msra.mxu0 %v48
  %72 = vmatprep.subr.bf16.mxu0 0
  %73 = vmatpush2.bf16.msra.mxu0 0
  %74 = vmatprep.subr.bf16.mxu0 0
  %75 = vmatpush2.bf16.msra.mxu0 0
  %76 = vmatprep.subr.bf16.mxu0 0
  %77 = vmatpush2.bf16.msra.mxu0 0
  %78 = vmatprep.subr.bf16.mxu0 0
  %79 = vmatpush2.bf16.msra.mxu0 0
  %80 = vmatprep.subr.bf16.mxu0 0
  %81 = vmatpush2.bf16.msra.mxu0 0
  %82 = vmatprep.subr.bf16.mxu0 0
  %83 = vmatpush2.bf16.msra.mxu0 0
  %84 = vmatprep.subr.bf16.mxu0 0
  %85 = vmatpush2.bf16.msra.mxu0 0
  %86 = vmatprep.subr.bf16.mxu0 0
  %87 = vmatpush2.bf16.msra.mxu0 0
  %88 = vmatprep.mubr.bf16.mxu0 0
  %89 = vmatmul.mubr.bf16.gmra.mxu0 %v54
  %v90 = vpop.f32.mrf.mxu0
  %v91 = vadd.f32 %v38, %v90
  %v92 = vpop.f32.mrf.mxu0
  %v93 = vpop.f32.mrf.mxu0
  %v94 = vpop.f32.mrf.mxu0
  %95 = vdwg.mxu0
  %v96 = vmax.f32 %v91, 0.0
  %v97 = vpack.c.bf16 %v96, %v96
  %v98 = vld [vmem:[%s3] sm:$0xf]
  %v99 = vld [vmem:[%s3 + $0x4] sm:$0xf]
  %v100 = vld [vmem:[%s3 + $0x8] sm:$0xf]
  %v101 = vld [vmem:[%s3 + $0xc] sm:$0xf]
  %v102 = vld [vmem:[%s3 + $0x10] sm:$0xf]
  %v103 = vld [vmem:[%s3 + $0x14] sm:$0xf]
  %v104 = vld [vmem:[%s3 + $0x18] sm:$0xf]
  %v105 = vld [vmem:[%s3 + $0x1c] sm:$0xf]
  %v106 = vld [vmem:[%s3 + $0x20] sm:$0xf]
  %v107 = vld [vmem:[%s3 + $0x24] sm:$0xf]
  %v108 = vld [vmem:[%s3 + $0x28] sm:$0xf]
  %v109 = vld [vmem:[%s3 + $0x2c] sm:$0xf]
  %v110 = vld [vmem:[%s3 + $0x30] sm:$0xf]
  %v111 = vld [vmem:[%s3 + $0x34] sm:$0xf]
  %v112 = vld [vmem:[%s3 + $0x38] sm:$0xf]
  %v113 = vld [vmem:[%s3 + $0x3c] sm:$0xf]
  %v114 = vld [vmem:[%s4] sm:$0x1]
  %v116 = vlaneseq
  %v117 = vshrl.u32 %v116, 7
  %v118 = vsub.s32 0, %v117
  %v119 = vrot.slane %v114, %v118
  %v137 = vunpack.c.l.b16 %v98
  %v138 = vunpack.c.l.b16 %v99
  %v139 = vunpack.c.l.b16 %v100
  %v140 = vunpack.c.l.b16 %v101
  %v141 = vunpack.c.l.b16 %v102
  %v142 = vunpack.c.l.b16 %v103
  %v143 = vunpack.c.l.b16 %v104
  %v144 = vunpack.c.l.b16 %v105
  %v145 = vunpack.c.l.b16 %v106
  %v146 = vunpack.c.l.b16 %v107
  %v147 = vunpack.c.l.b16 %v108
  %v148 = vunpack.c.l.b16 %v109
  %v149 = vunpack.c.l.b16 %v110
  %v150 = vunpack.c.l.b16 %v111
  %v151 = vunpack.c.l.b16 %v112
  %v152 = vunpack.c.l.b16 %v113
  %v153 = vpack.c.b16 %v138, %v137
  %v154 = vpack.c.b16 %v140, %v139
  %v155 = vpack.c.b16 %v142, %v141
  %v156 = vpack.c.b16 %v144, %v143
  %v157 = vpack.c.b16 %v146, %v145
  %v158 = vpack.c.b16 %v148, %v147
  %v159 = vpack.c.b16 %v150, %v149
  %v160 = vpack.c.b16 %v152, %v151
  %169 = vmatprep.subr.bf16.mxu0 0
  %170 = vmatpush1.bf16.msra.mxu0 %v160
  %171 = vmatprep.subr.bf16.mxu0 0
  %172 = vmatpush1.bf16.msra.mxu0 %v159
  %173 = vmatprep.subr.bf16.mxu0 0
  %174 = vmatpush1.bf16.msra.mxu0 %v158
  %175 = vmatprep.subr.bf16.mxu0 0
  %176 = vmatpush1.bf16.msra.mxu0 %v157
  %177 = vmatprep.subr.bf16.mxu0 0
  %178 = vmatpush1.bf16.msra.mxu0 %v156
  %179 = vmatprep.subr.bf16.mxu0 0
  %180 = vmatpush1.bf16.msra.mxu0 %v155
  %181 = vmatprep.subr.bf16.mxu0 0
  %182 = vmatpush1.bf16.msra.mxu0 %v154
  %183 = vmatprep.subr.bf16.mxu0 0
  %184 = vmatpush1.bf16.msra.mxu0 %v153
  %185 = vmatprep.subr.bf16.mxu0 0
  %186 = vmatpush2.bf16.msra.mxu0 0
  %187 = vmatprep.subr.bf16.mxu0 0
  %188 = vmatpush2.bf16.msra.mxu0 0
  %189 = vmatprep.subr.bf16.mxu0 0
  %190 = vmatpush2.bf16.msra.mxu0 0
  %191 = vmatprep.subr.bf16.mxu0 0
  %192 = vmatpush2.bf16.msra.mxu0 0
  %193 = vmatprep.subr.bf16.mxu0 0
  %194 = vmatpush2.bf16.msra.mxu0 0
  %195 = vmatprep.subr.bf16.mxu0 0
  %196 = vmatpush2.bf16.msra.mxu0 0
  %197 = vmatprep.subr.bf16.mxu0 0
  %198 = vmatpush2.bf16.msra.mxu0 0
  %199 = vmatprep.subr.bf16.mxu0 0
  %200 = vmatpush2.bf16.msra.mxu0 0
  %201 = vmatprep.mubr.bf16.mxu0 0
  %202 = vmatmul.mubr.bf16.gmra.mxu0 %v97
  %v203 = vpop.f32.mrf.mxu0
  %v204 = vadd.f32 %v119, %v203
  %v205 = vpop.f32.mrf.mxu0
  %v206 = vpop.f32.mrf.mxu0
  %v207 = vpop.f32.mrf.mxu0
  %208 = vdwg.mxu0
  %v209 = vmax.f32 %v204, 0.0
  %v210 = vpack.c.bf16 %v209, %v209
  %v211 = vld [vmem:[%s5] sm:$0xf]
  %v212 = vld [vmem:[%s5 + $0x4] sm:$0xf]
  %v213 = vld [vmem:[%s5 + $0x8] sm:$0xf]
  %v214 = vld [vmem:[%s5 + $0xc] sm:$0xf]
  %v215 = vld [vmem:[%s5 + $0x10] sm:$0xf]
  %v216 = vld [vmem:[%s5 + $0x14] sm:$0xf]
  %v217 = vld [vmem:[%s5 + $0x18] sm:$0xf]
  %v218 = vld [vmem:[%s5 + $0x1c] sm:$0xf]
  %v219 = vld [vmem:[%s6] sm:$0x1]
  %v221 = vlaneseq
  %v222 = vshrl.u32 %v221, 7
  %v223 = vsub.s32 0, %v222
  %v224 = vrot.slane %v219, %v223
  %v234 = vunpack.c.l.b16 %v211
  %v235 = vunpack.c.l.b16 %v212
  %v236 = vunpack.c.l.b16 %v213
  %v237 = vunpack.c.l.b16 %v214
  %v238 = vunpack.c.l.b16 %v215
  %v239 = vunpack.c.l.b16 %v216
  %v240 = vunpack.c.l.b16 %v217
  %v241 = vunpack.c.l.b16 %v218
  %v242 = vpack.c.b16 %v235, %v234
  %v243 = vpack.c.b16 %v237, %v236
  %v244 = vpack.c.b16 %v239, %v238
  %v245 = vpack.c.b16 %v241, %v240
  %vm250 = vcmask 523264
  %v252 = vsel %vm250, %v210, 0
  %254 = vmatprep.subr.bf16.mxu0 0
  %255 = vmatpush1.bf16.msra.mxu0 0
  %256 = vmatprep.subr.bf16.mxu0 0
  %257 = vmatpush1.bf16.msra.mxu0 0
  %258 = vmatprep.subr.bf16.mxu0 0
  %259 = vmatpush1.bf16.msra.mxu0 0
  %260 = vmatprep.subr.bf16.mxu0 0
  %261 = vmatpush1.bf16.msra.mxu0 0
  %262 = vmatprep.subr.bf16.mxu0 0
  %263 = vmatpush1.bf16.msra.mxu0 %v245
  %264 = vmatprep.subr.bf16.mxu0 0
  %265 = vmatpush1.bf16.msra.mxu0 %v244
  %266 = vmatprep.subr.bf16.mxu0 0
  %267 = vmatpush1.bf16.msra.mxu0 %v243
  %268 = vmatprep.subr.bf16.mxu0 0
  %269 = vmatpush1.bf16.msra.mxu0 %v242
  %270 = vmatprep.subr.bf16.mxu0 0
  %271 = vmatpush2.bf16.msra.mxu0 0
  %272 = vmatprep.subr.bf16.mxu0 0
  %273 = vmatpush2.bf16.msra.mxu0 0
  %274 = vmatprep.subr.bf16.mxu0 0
  %275 = vmatpush2.bf16.msra.mxu0 0
  %276 = vmatprep.subr.bf16.mxu0 0
  %277 = vmatpush2.bf16.msra.mxu0 0
  %278 = vmatprep.subr.bf16.mxu0 0
  %279 = vmatpush2.bf16.msra.mxu0 0
  %280 = vmatprep.subr.bf16.mxu0 0
  %281 = vmatpush2.bf16.msra.mxu0 0
  %282 = vmatprep.subr.bf16.mxu0 0
  %283 = vmatpush2.bf16.msra.mxu0 0
  %284 = vmatprep.subr.bf16.mxu0 0
  %285 = vmatpush2.bf16.msra.mxu0 0
  %286 = vmatprep.mubr.bf16.mxu0 0
  %287 = vmatmul.mubr.bf16.gmra.mxu0 %v252
  %v288 = vpop.f32.mrf.mxu0
  %v289 = vadd.f32 %v224, %v288
  %v290 = vpop.f32.mrf.mxu0
  %v291 = vpop.f32.mrf.mxu0
  %v292 = vpop.f32.mrf.mxu0
  %293 = vdwg.mxu0
  %vm294 = vcmask 15360
  %295 = vst.msk [vmem:[%s7] sm:$0xff] %vm294, %v289
  // Predicated region
  $region30: #{tpu_custom_call.1} parent=0 // pred_check
    _
  $region31: #{tpu_custom_call.1} parent=0 // pred_check_branch
    %297 = sbr.rel (0) target = $region33
  $region32: #{tpu_custom_call.1} parent=0 // pred_region
    _
  $region33: #{tpu_custom_call.1} parent=0 // pred_fallthru
    _
  // Predicated region
  $region34: #{tpu_custom_call.1} parent=0 // pred_check
    _
  $region35: #{tpu_custom_call.1} parent=0 // pred_check_branch
    %299 = sbr.rel (0) target = $region37
  $region36: #{tpu_custom_call.1} parent=0 // pred_region
    _
  $region37: #{tpu_custom_call.1} parent=0 // pred_fallthru
    _

</llo_original>
